<compile_context>
chip_gen: v5e
topology: v5e:2x2
jax: 0.10.0
libtpu: 0.0.40
codegen_flags: <defaults>
</compile_context>

<pallas_src>
import jax
import jax.numpy as jnp
from jax.experimental import pallas as pl
from jax.experimental.pallas import tpu as pltpu


def _linear_kernel(feat_ref, w_ref, b_ref, out_ref):
    # feat_ref: [rows, D] (input dtype), w_ref: [D, 1] (input dtype),
    # b_ref: [1] f32 in SMEM, out_ref: [rows, 1] f32.
    # The D-contraction runs on the MXU with f32 accumulation; the feature tile is fed
    # in its native dtype (no f32 upcast of the whole block).
    out_ref[...] = (
        jnp.dot(feat_ref[...], w_ref[...], preferred_element_type=jnp.float32)
        + b_ref[0]
    )


def _softmax_kernel(logit_ref, out_ref):
    # logit_ref: [tb, bag] f32, out_ref: [tb, bag] (features dtype).
    # Per-bag stable softmax: one exp over the tile + a per-row reciprocal (EUP slot);
    # no log and no second exp. The cast to the output dtype happens at the store.
    x = logit_ref[...]
    m = jnp.max(x, axis=1, keepdims=True)
    p = jnp.exp(x - m)
    denom = jnp.sum(p, axis=1, keepdims=True)
    out_ref[...] = (p * pl.reciprocal(denom, approx=False)).astype(out_ref.dtype)


def default_attention_forward(features, bag_size, weight, bias, *,
                              feat_tile_bytes=2 * 1024 * 1024,
                              logit_tile_bytes=1 * 1024 * 1024):
    """features: [N, D] with N % bag_size == 0; weight: [D, 1]; bias: scalar or [1].

    Returns attention of shape [N // bag_size, bag_size, 1] in features.dtype.
    """
    N, D = features.shape
    assert N % bag_size == 0, "N must be a multiple of bag_size"
    B = N // bag_size
    dtype = features.dtype

    w = jnp.asarray(weight, dtype).reshape(D, 1)     # feed the MXU in the input dtype
    b = jnp.asarray(bias, jnp.float32).reshape(1)    # scalar bias lives in SMEM

    # ---- Stage 1: logits = features @ w + b (row-tiled, MXU, f32 accumulation) -------
    itemsize = jnp.dtype(dtype).itemsize
    rows_per_tile = max(8, feat_tile_bytes // max(1, D * itemsize))
    if rows_per_tile >= N:
        rows_per_tile = N                               # single full-extent block
    else:
        rows_per_tile = max(8, (rows_per_tile // 8) * 8)  # sublane-aligned block rows
    n_row_tiles = -(-N // rows_per_tile)                # cdiv; ragged last tile is fine

    logits = pl.pallas_call(
        _linear_kernel,
        grid=(n_row_tiles,),
        in_specs=[
            pl.BlockSpec((rows_per_tile, D), lambda i: (i, 0)),
            pl.BlockSpec((D, 1), lambda i: (0, 0)),
            pl.BlockSpec(memory_space=pltpu.MemorySpace.SMEM),
        ],
        out_specs=pl.BlockSpec((rows_per_tile, 1), lambda i: (i, 0)),
        out_shape=jax.ShapeDtypeStruct((N, 1), jnp.float32),
        compiler_params=pltpu.CompilerParams(dimension_semantics=("parallel",)),
    )(features, w, b)

    # Free, contiguous XLA reshape (the PyTorch .view(-1, bag_size)): [N, 1] -> [B, bag].
    logits2d = logits.reshape(B, bag_size)

    # ---- Stage 2: per-bag softmax (the bag axis stays whole inside every tile) -------
    bags_per_tile = max(1, logit_tile_bytes // max(1, bag_size * 4))
    if bags_per_tile >= B:
        bags_per_tile = B                               # single full-extent block
    else:
        bags_per_tile = max(8, (bags_per_tile // 8) * 8)
    n_bag_tiles = -(-B // bags_per_tile)

    attn = pl.pallas_call(
        _softmax_kernel,
        grid=(n_bag_tiles,),
        in_specs=[pl.BlockSpec((bags_per_tile, bag_size), lambda i: (i, 0))],
        out_specs=pl.BlockSpec((bags_per_tile, bag_size), lambda i: (i, 0)),
        out_shape=jax.ShapeDtypeStruct((B, bag_size), dtype),
        compiler_params=pltpu.CompilerParams(dimension_semantics=("parallel",)),
    )(logits2d)

    return attn[..., None]   # [B, bag_size, 1] (free metadata reshape)


if __name__ == "__main__":
    key = jax.random.PRNGKey(0)

    def ref_attention(features, bag_size, weight, bias):
        Bb = features.shape[0] // bag_size
        logits = (features @ weight + bias).reshape(Bb, bag_size)
        return jax.nn.softmax(logits.astype(jnp.float32), axis=1)[..., None].astype(
            features.dtype)

    def make_inputs(k, N, D):
        k_feat, k_w, k_b = jax.random.split(k, 3)
        feats = jax.random.normal(k_feat, (N, D), dtype=jnp.float32)
        bound = 1.0 / (D ** 0.5)          # deterministic nn.Linear-style init range
        w = jax.random.uniform(k_w, (D, 1), jnp.float32, minval=-bound, maxval=bound)
        b = jax.random.uniform(k_b, (1,), jnp.float32, minval=-bound, maxval=bound)
        return feats, w, b

    # Case 1: small single-tile problem (input_dims=32, bag_size=8, 2 bags).
    D, bag_size, B = 32, 8, 2
    features, weight, bias = make_inputs(key, B * bag_size, D)
    attn = default_attention_forward(features, bag_size, weight, bias)
    jax.block_until_ready(attn)
    assert attn.shape == (B, bag_size, 1)
    assert jnp.allclose(attn, ref_attention(features, bag_size, weight, bias),
                        atol=1e-5), "case 1 mismatch vs reference"

    # Case 2: multi-tile path (small tile budgets force grid > 1 in both stages).
    D, bag_size, B = 32, 8, 64
    features, weight, bias = make_inputs(jax.random.fold_in(key, 1), B * bag_size, D)
    attn = default_attention_forward(features, bag_size, weight, bias,
                                     feat_tile_bytes=8 * 1024, logit_tile_bytes=512)
    jax.block_until_ready(attn)
    assert attn.shape == (B, bag_size, 1)
    assert jnp.allclose(attn, ref_attention(features, bag_size, weight, bias),
                        atol=1e-5), "case 2 mismatch vs reference"

    # Case 3: ragged last tiles (tile sizes that do not divide the problem).
    D, bag_size, B = 32, 8, 10
    features, weight, bias = make_inputs(jax.random.fold_in(key, 2), B * bag_size, D)
    attn = default_attention_forward(features, bag_size, weight, bias,
                                     feat_tile_bytes=4 * 1024, logit_tile_bytes=256)
    jax.block_until_ready(attn)
    assert attn.shape == (B, bag_size, 1)
    assert jnp.allclose(attn, ref_attention(features, bag_size, weight, bias),
                        atol=1e-5), "case 3 mismatch vs reference"

    print("KERNEL_OK")
</pallas_src>

<mosaic_0001>
module attributes {stable_mosaic.version = 11 : i64} {
  func.func @_linear_kernel(%arg0: i32, %arg1: memref<16x32xf32, #tpu.memory_space<vmem>>, %arg2: memref<32x1xf32, #tpu.memory_space<vmem>>, %arg3: memref<1xf32, #tpu.memory_space<smem>>, %arg4: memref<16x1xf32, #tpu.memory_space<vmem>>) attributes {dimension_semantics = [#tpu.dimension_semantics<parallel>], iteration_bounds = array<i64: 1>, scalar_prefetch = 0 : i64, scratch_operands = 0 : i64, tpu.core_type = #tpu.core_type<tc>, window_params = [{transform_indices = @transform_0, window_bounds = array<i64: 16, 32>}, {pipeline_mode = #tpu.pipeline_mode<synchronous>, transform_indices = @transform_1, window_bounds = array<i64: 32, 1>}, {transform_indices = @transform_2, window_bounds = array<i64: 1>}, {transform_indices = @transform_3, window_bounds = array<i64: 16, 1>}]} {
    %c0 = arith.constant 0 : index
    %c0_0 = arith.constant 0 : index
    %0 = vector.load %arg1[%c0, %c0_0] : memref<16x32xf32, #tpu.memory_space<vmem>>, vector<16x32xf32>
    %c0_1 = arith.constant 0 : index
    %c0_2 = arith.constant 0 : index
    %1 = vector.load %arg2[%c0_1, %c0_2] : memref<32x1xf32, #tpu.memory_space<vmem>>, vector<32x1xf32>
    %cst = arith.constant dense<0.000000e+00> : vector<16x1xf32>
    %2 = tpu.matmul %0, %1, %cst {dimension_numbers = #tpu.dot_dimension_numbers<[1], [0], [0], [1], [0, 0, 1, 1], [], []>} : vector<16x32xf32>, vector<32x1xf32>, vector<16x1xf32> -> vector<16x1xf32>
    %c0_3 = arith.constant 0 : index
    %3 = memref.load %arg3[%c0_3] : memref<1xf32, #tpu.memory_space<smem>>
    %4 = vector.broadcast %3 : f32 to vector<16x1xf32>
    %5 = arith.addf %2, %4 : vector<16x1xf32>
    %c0_4 = arith.constant 0 : index
    %c0_5 = arith.constant 0 : index
    %6 = vector.load %arg4[%c0_4, %c0_5] : memref<16x1xf32, #tpu.memory_space<vmem>>, vector<16x1xf32>
    tpu.vector_store %arg4[%c0_4, %c0_5], %5 {strides = array<i32>} : memref<16x1xf32, #tpu.memory_space<vmem>>, vector<16x1xf32>,
    return
  }
  func.func @transform_0(%arg0: i32) -> (i32, i32) {
    %c0_i32 = arith.constant 0 : i32
    %c0_i32_0 = arith.constant 0 : i32
    return %arg0, %c0_i32 : i32, i32
  }
  func.func @transform_1(%arg0: i32) -> (i32, i32) {
    %c0_i32 = arith.constant 0 : i32
    %c0_i32_0 = arith.constant 0 : i32
    %c0_i32_1 = arith.constant 0 : i32
    return %c0_i32, %c0_i32_0 : i32, i32
  }
  func.func @transform_2(%arg0: i32) -> i32 {
    %c0_i32 = arith.constant 0 : i32
    %c0_i32_0 = arith.constant 0 : i32
    return %c0_i32 : i32
  }
  func.func @transform_3(%arg0: i32) -> (i32, i32) {
    %c0_i32 = arith.constant 0 : i32
    %c0_i32_0 = arith.constant 0 : i32
    return %arg0, %c0_i32 : i32, i32
  }
}

</mosaic_0001>

<llo_original>
// kernel: tpu_custom_call.1
$region0: #{tpu_custom_call.1}
  #allocation0 [shape = 'u32[]', space=smem, size = 0x4, offset = 0x4, fixed_abs, tag = 'smem constant byte address 0x4 - core index']
  #allocation1 [shape = 'u32[72,128]{1,0:T(1,128)}', space=vmem, size = 0x9000, scoped, tag = 'internal scratch']
  #allocation2 [shape = 'f32[1]{0:T(128)S(6)}', space=smem, size = 0x200, scoped, tag = 'scoped memory for tpu_custom_call.1']
  %s0 = inlined_call_operand.vmem [shape: f32[16,32], index: 0, kind: input, shape index: {}]
  %s1 = inlined_call_operand.vmem [shape: f32[32,1], index: 1, kind: input, shape index: {}]
  %s2 = inlined_call_operand.<no memory space> [shape: f32[1], index: 2, kind: input, shape index: {}]
  %s3 = inlined_call_operand.vmem [shape: f32[16,1], index: 3, kind: output, shape index: {}]
  %s4 = sld [smem:[#allocation0]]
  $region22: #{tpu_custom_call.1} parent=0
    _
  %s6 = ssub.s32 1, %s4
  %s7 = scalar_select 0, %s6, %s4
  %8 = sst [smem:[#allocation2]] %s2
  // Predicated region
  $region2: #{tpu_custom_call.1} parent=0 // pred_check
    _
  $region3: #{tpu_custom_call.1} parent=0 // pred_check_branch
    %10 = sbr.rel (0) target = $region5
  $region4: #{tpu_custom_call.1} parent=0 // pred_region
    _
  $region5: #{tpu_custom_call.1} parent=0 // pred_fallthru
    _
  // Predicated region
  $region6: #{tpu_custom_call.1} parent=0 // pred_check
    _
  $region7: #{tpu_custom_call.1} parent=0 // pred_check_branch
    %12 = sbr.rel (0) target = $region9
  $region8: #{tpu_custom_call.1} parent=0 // pred_region
    _
  $region9: #{tpu_custom_call.1} parent=0 // pred_fallthru
    _
  // Predicated region
  $region10: #{tpu_custom_call.1} parent=0 // pred_check
    _
  $region11: #{tpu_custom_call.1} parent=0 // pred_check_branch
    %14 = sbr.rel (0) target = $region13
  $region12: #{tpu_custom_call.1} parent=0 // pred_region
    _
  $region13: #{tpu_custom_call.1} parent=0 // pred_fallthru
    _
  %v15 = vld [vmem:[%s0] sm:$0xff]
  %v16 = vld [vmem:[%s0 + $0x8] sm:$0xff]
  %v17 = vld [vmem:[%s1] sm:$0xff]
  %v18 = vld [vmem:[%s1 + $0x8] sm:$0xff]
  %v19 = vld [vmem:[%s1 + $0x10] sm:$0xff]
  %v20 = vld [vmem:[%s1 + $0x18] sm:$0xff]
  %s21 = sld [smem:[#allocation2]]
  %v22 = vstv %s21
  %vm23 = vcmask 261120
  %v25 = vsel %vm23, %v15, 0
  %v28 = vsel %vm23, %v16, 0
  %30 = vmatpush.msra.mxu0 0.0
  %31 = vmatpush.msra.mxu0 0.0
  %32 = vmatpush.msra.mxu0 0.0
  %33 = vmatpush.msra.mxu0 0.0
  %34 = vmatpush.msra.mxu0 0.0
  %35 = vmatpush.msra.mxu0 0.0
  %36 = vmatpush.msra.mxu0 0.0
  %37 = vmatpush.msra.mxu0 0.0
  %38 = vmatpush.msra.mxu0 0.0
  %39 = vmatpush.msra.mxu0 0.0
  %40 = vmatpush.msra.mxu0 0.0
  %41 = vmatpush.msra.mxu0 0.0
  %42 = vmatpush.msra.mxu0 %v20
  %43 = vmatpush.msra.mxu0 %v19
  %44 = vmatpush.msra.mxu0 %v18
  %45 = vmatpush.msra.mxu0 %v17
  %46 = vmatmul.f32.gmra.mxu0 %v25
  %v47 = vpop.f32.mrf.mxu0
  %v48 = vadd.f32 %v22, %v47
  %49 = vmatmul.f32.gmra.mxu0 %v28
  %v50 = vpop.f32.mrf.mxu0
  %v51 = vadd.f32 %v22, %v50
  %52 = vdwg.mxu0
  %vm53 = vcmask 7168
  %54 = vst.msk [vmem:[%s3] sm:$0xff] %vm53, %v48
  %55 = vst.msk [vmem:[%s3 + $0x8] sm:$0xff] %vm53, %v51
  // Predicated region
  $region14: #{tpu_custom_call.1} parent=0 // pred_check
    _
  $region15: #{tpu_custom_call.1} parent=0 // pred_check_branch
    %57 = sbr.rel (0) target = $region17
  $region16: #{tpu_custom_call.1} parent=0 // pred_region
    _
  $region17: #{tpu_custom_call.1} parent=0 // pred_fallthru
    _
  // Predicated region
  $region18: #{tpu_custom_call.1} parent=0 // pred_check
    _
  $region19: #{tpu_custom_call.1} parent=0 // pred_check_branch
    %59 = sbr.rel (0) target = $region21
  $region20: #{tpu_custom_call.1} parent=0 // pred_region
    _
  $region21: #{tpu_custom_call.1} parent=0 // pred_fallthru
    _

</llo_original>
